<compile_context>
chip_gen: v7x
topology: tpu7x:2x2x1
jax: 0.10.0
libtpu: 0.0.40
codegen_flags: <defaults>
</compile_context>

<pallas_src>
import functools

import jax
import jax.numpy as jnp
from jax import lax
from jax.experimental import pallas as pl
from jax.experimental.pallas import tpu as pltpu

LANES = 128
MAX_BLOCK_ROWS = 8192   # (8192, 128) f32 = 4 MiB; keep a multiple of 32.
ACC_ROWS = 512          # fixed (512, 128) f32 accumulator = 256 KiB
NUM_CORES = 2           # leading parallel axis; v7x maps it onto its 2 TCs


def _rmse_partial_kernel(x_ref, y_ref, o_ref, acc_ref, *, rows, block_rows,
                         acc_rows, per_core, mask_threshold):
    c = pl.program_id(0)           # "core" (parallel) index
    i = pl.program_id(1)           # reduction step within this core
    g = c * per_core + i           # global row-block this step is responsible for
    nsub = block_rows // acc_rows  # static

    @pl.when(i == 0)
    def _():
        acc_ref[...] = jnp.zeros_like(acc_ref)

    def accumulate(masked):
        # Accumulate the block in fixed-size sub-slices read directly from the
        # input refs: pure VPU work, temporaries sized by the accumulator, not
        # by the (large) DMA block.
        for s in range(nsub):
            lo = s * acc_rows
            xs = x_ref[lo:lo + acc_rows, :].astype(jnp.float32)
            ys = y_ref[lo:lo + acc_rows, :].astype(jnp.float32)
            d = xs - ys
            dd = d * d
            if masked:
                # Global row index; rows past `rows` hold unspecified data
                # (partial/overshoot block) -> select (not multiply) them away.
                ridx = (g * block_rows + lo) + lax.broadcasted_iota(
                    jnp.int32, (acc_rows, 1), 0)
                dd = jnp.where(ridx < rows, dd, 0.0)
            acc_ref[...] += dd

    if mask_threshold is None:
        accumulate(False)
    else:
        # Mask only on the step(s) that actually need it (ragged last block
        # and/or overshoot steps); all earlier steps take the unmasked path.
        @pl.when(g < mask_threshold)
        def _():
            accumulate(False)

        @pl.when(g >= mask_threshold)
        def _():
            accumulate(True)

    @pl.when(i == per_core - 1)
    def _():
        # Single cross-lane reduce per core; wrapper combines the partials.
        total = jnp.sum(acc_ref[...])
        o_ref[...] = jnp.full(o_ref.shape, total, dtype=jnp.float32)


def rmse_loss(x, y, eps=1e-6, *, max_block_rows=MAX_BLOCK_ROWS,
              acc_rows=ACC_ROWS):
    assert x.shape == y.shape, "x and y must have the same shape"
    n = x.size
    xf = x.reshape(-1)   # contiguous reshape: bitcast, no HBM copy
    yf = y.reshape(-1)

    rows = n // LANES
    rem = n % LANES
    main = rows * LANES

    # <=127-element lane-ragged tail: tiny XLA ops in the wrapper, so the
    # kernel never needs a padded copy of the full inputs.
    if rem:
        tx = xf[main:].astype(jnp.float32)
        ty = yf[main:].astype(jnp.float32)
        tail_sum = jnp.sum((tx - ty) ** 2)
    else:
        tail_sum = jnp.float32(0.0)

    if rows == 0:  # fewer than 128 elements total
        return jnp.sqrt(tail_sum * (1.0 / n) + eps)

    if rem:
        # TODO(synk): XLA may still materialize this prefix slice as one copy
        # for lane-ragged inputs; a fully copy-free ragged path needs 1-D blocks.
        x2d = xf[:main].reshape(rows, LANES)
        y2d = yf[:main].reshape(rows, LANES)
    else:
        x2d = xf.reshape(rows, LANES)
        y2d = yf.reshape(rows, LANES)

    if rows <= max_block_rows:
        block_rows = rows            # full-dim block: always legal, single block
        acc_rows_eff = rows
    else:
        block_rows = max_block_rows
        assert block_rows % acc_rows == 0 and block_rows % 8 == 0
        acc_rows_eff = acc_rows

    nblocks = pl.cdiv(rows, block_rows)
    ncores = NUM_CORES if nblocks >= NUM_CORES else 1
    per_core = pl.cdiv(nblocks, ncores)
    last_block = nblocks - 1

    ragged_last = (rows % block_rows) != 0
    overshoot = ncores * per_core > nblocks
    if ragged_last:
        mask_threshold = nblocks - 1
    elif overshoot:
        mask_threshold = nblocks
    else:
        mask_threshold = None

    def in_index_map(c, i):
        # Clamp overshoot steps (odd block count) to the last real block; their
        # contribution is masked to zero inside the kernel.
        return (jnp.minimum(c * per_core + i, last_block), 0)

    kernel = functools.partial(
        _rmse_partial_kernel, rows=rows, block_rows=block_rows,
        acc_rows=acc_rows_eff, per_core=per_core,
        mask_threshold=mask_threshold)

    partials = pl.pallas_call(
        kernel,
        out_shape=jax.ShapeDtypeStruct((ncores, 8, LANES), jnp.float32),
        grid_spec=pltpu.PrefetchScalarGridSpec(
            num_scalar_prefetch=0,
            grid=(ncores, per_core),
            in_specs=[
                pl.BlockSpec((block_rows, LANES), in_index_map),
                pl.BlockSpec((block_rows, LANES), in_index_map),
                # TODO(synk): sweep pipeline_mode=pl.Buffered(3) on v7x.
            ],
            out_specs=pl.BlockSpec((1, 8, LANES), lambda c, i: (c, 0, 0)),
            scratch_shapes=[pltpu.VMEM((acc_rows_eff, LANES), jnp.float32)],
        ),
        compiler_params=pltpu.CompilerParams(
            # Core split axis parallel (megacore on v7x); reduction sequential.
            dimension_semantics=("parallel", "arbitrary"),
            # 2 inputs x 2 buffers x 4 MiB + acc ~= 16.3 MiB > v5e's 16 MiB default.
            vmem_limit_bytes=32 * 1024 * 1024,
        ),
    )(x2d, y2d)

    total = jnp.sum(partials[:, 0, 0]) + tail_sum
    # Trace-time 1/n constant (avoids an f32 cast of n for n > 2^24);
    # eps is added inside the sqrt: sqrt(MSE + eps), matching the torch module.
    return jnp.sqrt(total * (1.0 / n) + eps)


def _check(shape, key, eps=1e-6, **kw):
    kx, ky = jax.random.split(key)
    x = jax.random.normal(kx, shape, dtype=jnp.float32)
    y = jax.random.normal(ky, shape, dtype=jnp.float32)
    loss = jax.block_until_ready(rmse_loss(x, y, eps, **kw))
    ref = jnp.sqrt(jnp.mean((x - y) ** 2) + eps)
    assert jnp.allclose(loss, ref, rtol=2e-5, atol=1e-6), (shape, loss, ref)


if __name__ == "__main__":
    key = jax.random.PRNGKey(0)
    k0, k1, k2, k3 = jax.random.split(key, 4)

    # Small NCHW input consistent with a typical use of this loss.
    _check((2, 4, 16, 16), k0)
    # Lane-ragged element count (exercises the wrapper-side tail path, no pad).
    _check((2, 3, 17, 19), k1)
    # Small config override: multi-block + 2-way split + ragged last block +
    # odd block count (overshoot clamp) + sub-slice accumulation.
    _check((4, 4, 130, 128), k2, max_block_rows=512, acc_rows=128)
    # Default config: two row-blocks -> both "cores", masked last block.
    _check((8, 4, 128, 260), k3)

    print("KERNEL_OK")
</pallas_src>

<mosaic_0001>
module attributes {stable_mosaic.version = 11 : i64} {
  func.func @_rmse_partial_kernel(%arg0: i32, %arg1: i32, %arg2: memref<16x128xf32, #tpu.memory_space<vmem>>, %arg3: memref<16x128xf32, #tpu.memory_space<vmem>>, %arg4: memref<1x8x128xf32, #tpu.memory_space<vmem>>, %arg5: memref<16x128xf32, #tpu.memory_space<vmem>>) attributes {dimension_semantics = [#tpu.dimension_semantics<parallel>, #tpu.dimension_semantics<arbitrary>], iteration_bounds = array<i64: 1, 1>, scalar_prefetch = 0 : i64, scratch_operands = 1 : i64, tpu.core_type = #tpu.core_type<tc>, window_params = [{transform_indices = @transform_0, window_bounds = array<i64: 16, 128>}, {transform_indices = @transform_1, window_bounds = array<i64: 16, 128>}, {transform_indices = @transform_2, window_bounds = array<i64: 1, 8, 128>}]} {
    %c0_i32 = arith.constant 0 : i32
    %0 = arith.cmpi eq, %arg1, %c0_i32 : i32
    %1 = arith.extui %0 : i1 to i32
    %c0_i32_0 = arith.constant 0 : i32
    %2 = arith.cmpi ne, %1, %c0_i32_0 : i32
    scf.if %2 {
      %cst = arith.constant 0.000000e+00 : f32
      %13 = vector.broadcast %cst : f32 to vector<16x128xf32>
      %c0_10 = arith.constant 0 : index
      %c0_11 = arith.constant 0 : index
      %14 = vector.load %arg5[%c0_10, %c0_11] : memref<16x128xf32, #tpu.memory_space<vmem>>, vector<16x128xf32>
      tpu.vector_store %arg5[%c0_10, %c0_11], %13 {strides = array<i32>} : memref<16x128xf32, #tpu.memory_space<vmem>>, vector<16x128xf32>,
    } else {
    }
    %c0 = arith.constant 0 : index
    %c0_1 = arith.constant 0 : index
    %3 = vector.load %arg2[%c0, %c0_1] : memref<16x128xf32, #tpu.memory_space<vmem>>, vector<16x128xf32>
    %c0_2 = arith.constant 0 : index
    %c0_3 = arith.constant 0 : index
    %4 = vector.load %arg3[%c0_2, %c0_3] : memref<16x128xf32, #tpu.memory_space<vmem>>, vector<16x128xf32>
    %5 = arith.subf %3, %4 : vector<16x128xf32>
    %6 = arith.mulf %5, %5 : vector<16x128xf32>
    %c0_4 = arith.constant 0 : index
    %c0_5 = arith.constant 0 : index
    %7 = vector.load %arg5[%c0_4, %c0_5] : memref<16x128xf32, #tpu.memory_space<vmem>>, vector<16x128xf32>
    %8 = arith.addf %7, %6 : vector<16x128xf32>
    %c0_6 = arith.constant 0 : index
    %c0_7 = arith.constant 0 : index
    %9 = vector.load %arg5[%c0_6, %c0_7] : memref<16x128xf32, #tpu.memory_space<vmem>>, vector<16x128xf32>
    tpu.vector_store %arg5[%c0_6, %c0_7], %8 {strides = array<i32>} : memref<16x128xf32, #tpu.memory_space<vmem>>, vector<16x128xf32>,
    %c0_i32_8 = arith.constant 0 : i32
    %10 = arith.cmpi eq, %arg1, %c0_i32_8 : i32
    %11 = arith.extui %10 : i1 to i32
    %c0_i32_9 = arith.constant 0 : i32
    %12 = arith.cmpi ne, %11, %c0_i32_9 : i32
    scf.if %12 {
      %c0_10 = arith.constant 0 : index
      %c0_11 = arith.constant 0 : index
      %13 = vector.load %arg5[%c0_10, %c0_11] : memref<16x128xf32, #tpu.memory_space<vmem>>, vector<16x128xf32>
      %14 = vector.shape_cast %13 : vector<16x128xf32> to vector<1x16x128xf32>
      %cst = arith.constant dense<0.000000e+00> : vector<1xf32>
      %15 = vector.multi_reduction <add>, %14, %cst [1, 2] : vector<1x16x128xf32> to vector<1xf32>
      %16 = vector.shape_cast %15 : vector<1xf32> to vector<1x1x1xf32>
      %17 = vector.extract %16[0, 0, 0] : f32 from vector<1x1x1xf32>
      %18 = vector.broadcast %17 : f32 to vector<1x8x128xf32>
      %c0_12 = arith.constant 0 : index
      %c0_13 = arith.constant 0 : index
      %c0_14 = arith.constant 0 : index
      %19 = vector.load %arg4[%c0_12, %c0_13, %c0_14] : memref<1x8x128xf32, #tpu.memory_space<vmem>>, vector<1x8x128xf32>
      tpu.vector_store %arg4[%c0_12, %c0_13, %c0_14], %18 {strides = array<i32>} : memref<1x8x128xf32, #tpu.memory_space<vmem>>, vector<1x8x128xf32>,
    } else {
    }
    return
  }
  func.func @transform_0(%arg0: i32, %arg1: i32) -> (i32, i32) {
    %c1_i32 = arith.constant 1 : i32
    %0 = arith.muli %arg0, %c1_i32 : i32
    %1 = arith.addi %0, %arg1 : i32
    %c0_i32 = arith.constant 0 : i32
    %2 = arith.minsi %1, %c0_i32 : i32
    %c0_i32_0 = arith.constant 0 : i32
    %c0_i32_1 = arith.constant 0 : i32
    return %2, %c0_i32_0 : i32, i32
  }
  func.func @transform_1(%arg0: i32, %arg1: i32) -> (i32, i32) {
    %c1_i32 = arith.constant 1 : i32
    %0 = arith.muli %arg0, %c1_i32 : i32
    %1 = arith.addi %0, %arg1 : i32
    %c0_i32 = arith.constant 0 : i32
    %2 = arith.minsi %1, %c0_i32 : i32
    %c0_i32_0 = arith.constant 0 : i32
    %c0_i32_1 = arith.constant 0 : i32
    return %2, %c0_i32_0 : i32, i32
  }
  func.func @transform_2(%arg0: i32, %arg1: i32) -> (i32, i32, i32) {
    %c0_i32 = arith.constant 0 : i32
    %c0_i32_0 = arith.constant 0 : i32
    %c0_i32_1 = arith.constant 0 : i32
    return %arg0, %c0_i32, %c0_i32_0 : i32, i32, i32
  }
}

</mosaic_0001>

<llo_original>
// kernel: tpu_custom_call.1
$region0: #{tpu_custom_call.1}
  #allocation0 [shape = 'u32[]', space=smem, size = 0x4, offset = 0x4, fixed_abs, tag = 'smem constant byte address 0x4 - core index']
  #allocation1 [shape = 'u32[144,128]{1,0:T(1,128)}', space=vmem, size = 0x12000, scoped, tag = 'internal scratch']
  #allocation2 [shape = 'f32[16,128]{1,0:T(8,128)}', space=vmem, size = 0x2000, scoped, tag = 'scratch operand']
  %s0 = inlined_call_operand.hbm [shape: f32[16,128], index: 0, kind: input, shape index: {}]
  %s1 = inlined_call_operand.hbm [shape: f32[16,128], index: 1, kind: input, shape index: {}]
  %s2 = inlined_call_operand.hbm [shape: f32[1,8,128], index: 2, kind: output, shape index: {}]
  %s3 = sld [smem:[#allocation0]]
  $region34: #{tpu_custom_call.1} parent=0
    _
  %s5 = ssub.s32 1, %s3
  %s6 = scalar_select 0, %s5, %s3
  $region1: #{tpu_custom_call.1} parent=0
    #allocation3 [shape = 'u8[8192]{0}', space=vmem, size = 0x2000, scoped, tag = 'input window, operand 0, single buffered']
    #allocation4 [shape = 's32[1]{0}', space=sflag, size = 0x4, scoped, tag = 'scoped memory for tpu_custom_call.1']
    #allocation5 [shape = 's32[1]{0}', space=sflag, size = 0x4, scoped, tag = 'scoped memory for tpu_custom_call.1']
    #allocation6 [shape = 'u8[8192]{0}', space=vmem, size = 0x2000, scoped, tag = 'input window, operand 1, single buffered']
    #allocation7 [shape = 's32[1]{0}', space=sflag, size = 0x4, scoped, tag = 'scoped memory for tpu_custom_call.1']
    #allocation8 [shape = 'u8[4096]{0}', space=vmem, size = 0x1000, scoped, tag = 'output window, operand 0, single buffered']
    %7 = vsyncpa [#allocation4], 0
    %8 = vsyncpa [#allocation7], 0
    %9 = vsyncpa [#allocation5], 0
    // Predicated region
    $region2: #{tpu_custom_call.1} parent=1 // pred_check
      _
    $region3: #{tpu_custom_call.1} parent=1 // pred_check_branch
      %11 = sbr.rel (0) target = $region5
    $region4: #{tpu_custom_call.1} parent=1 // pred_region
      %s12 = sadd.s32 0, 0
      %p13 = scmp.lt.s32.totalorder %s12, 0
      %s14 = scalar_select %p13, %s12, 0
      %s15 = smul.u32 2, %s14
      %s17 = ssub.s32 256, 256
      %18 = vsyncadd [#allocation4], %s17
      %s19 = smul.addr %s15, 128
      %s20 = scalar_lea.hbm %s0, %s19
      %s21 = sshll.u32 [#allocation3], 4
      %s22 = int_to_ptr.vmem [resolvable:$true] %s21
      %27 = dma.hbm_to_vmem [thread:$0]  %s20, 256, %s22, [#allocation4], 128, 128, 8
    $region5: #{tpu_custom_call.1} parent=1 // pred_fallthru
      _
    // Predicated region
    $region6: #{tpu_custom_call.1} parent=1 // pred_check
      _
    $region7: #{tpu_custom_call.1} parent=1 // pred_check_branch
      %29 = sbr.rel (0) target = $region9
    $region8: #{tpu_custom_call.1} parent=1 // pred_region
      %s30 = sadd.s32 0, 0
      %p31 = scmp.lt.s32.totalorder %s30, 0
      %s32 = scalar_select %p31, %s30, 0
      %s33 = smul.u32 2, %s32
      %s35 = ssub.s32 256, 256
      %36 = vsyncadd [#allocation7], %s35
      %s37 = smul.addr %s33, 128
      %s38 = scalar_lea.hbm %s1, %s37
      %s39 = sshll.u32 [#allocation6], 4
      %s40 = int_to_ptr.vmem [resolvable:$true] %s39
      %45 = dma.hbm_to_vmem [thread:$0]  %s38, 256, %s40, [#allocation7], 128, 128, 8
    $region9: #{tpu_custom_call.1} parent=1 // pred_fallthru
      _
    // Predicated region
    $region10: #{tpu_custom_call.1} parent=1 // pred_check
      _
    $region11: #{tpu_custom_call.1} parent=1 // pred_check_branch
      %47 = sbr.rel (0) target = $region13
    $region12: #{tpu_custom_call.1} parent=1 // pred_region
      %48 = dma.done [#allocation4], 256
    $region13: #{tpu_custom_call.1} parent=1 // pred_fallthru
      _
    // Predicated region
    $region14: #{tpu_custom_call.1} parent=1 // pred_check
      _
    $region15: #{tpu_custom_call.1} parent=1 // pred_check_branch
      %50 = sbr.rel (0) target = $region17
    $region16: #{tpu_custom_call.1} parent=1 // pred_region
      %51 = dma.done [#allocation7], 256
    $region17: #{tpu_custom_call.1} parent=1 // pred_fallthru
      _
    %s52 = sadd.s32 0, 0
    %p53 = scmp.lt.s32.totalorder %s52, 0
    %s54 = scalar_select %p53, %s52, 0
    %s55 = smul.u32 2, %s54
    %s56 = sadd.s32 0, 0
    %p57 = scmp.lt.s32.totalorder %s56, 0
    %s58 = scalar_select %p57, %s56, 0
    %s59 = smul.u32 2, %s58
    %p60 = scmp.eq.s32.totalorder 0, 0
    // Predicated region
    $region18: #{tpu_custom_call.1} parent=1 // pred_check
      %p61 = pneg %p60
    $region19: #{tpu_custom_call.1} parent=1 // pred_check_branch
      %63 = sbr.rel (%p61) target = $region21
    $region20: #{tpu_custom_call.1} parent=1 // pred_region
      %64 = vst [vmem:[#allocation2] sm:$0xff] 0.0
      %65 = vst [vmem:[#allocation2 + $0x8] sm:$0xff] 0.0
    $region21: #{tpu_custom_call.1} parent=1 // pred_fallthru
      _
    %v66 = vld [vmem:[#allocation3] sm:$0xff]
    %v67 = vld [vmem:[#allocation3 + $0x8] sm:$0xff]
    %v68 = vld [vmem:[#allocation6] sm:$0xff]
    %v69 = vld [vmem:[#allocation6 + $0x8] sm:$0xff]
    %v70 = vsub.f32 %v66, %v68
    %v71 = vsub.f32 %v67, %v69
    %v72 = vmul.f32 %v70, %v70
    %v73 = vmul.f32 %v71, %v71
    %v74 = vld [vmem:[#allocation2] sm:$0xff]
    %v75 = vld [vmem:[#allocation2 + $0x8] sm:$0xff]
    %v76 = vadd.f32 %v74, %v72
    %v77 = vadd.f32 %v75, %v73
    %78 = vst [vmem:[#allocation2] sm:$0xff] %v76
    %79 = vst [vmem:[#allocation2 + $0x8] sm:$0xff] %v77
    // Predicated region
    $region22: #{tpu_custom_call.1} parent=1 // pred_check
      %p80 = pneg %p60
    $region23: #{tpu_custom_call.1} parent=1 // pred_check_branch
      %82 = sbr.rel (%p80) target = $region25
    $region24: #{tpu_custom_call.1} parent=1 // pred_region
      %v83 = vld [vmem:[#allocation2] sm:$0xff]
      %v84 = vld [vmem:[#allocation2 + $0x8] sm:$0xff]
      %v85 = vadd.f32 %v83, %v84
      %86 = vadd.xlane.f32.xlu0 %v85
      %v87 = vpop.xlane.xlu0 %86
      %v88 = vrot.slane %v87, 4
      %v89 = vadd.f32 %v87, %v88
      %v90 = vrot.slane %v89, 2
      %v91 = vadd.f32 %v89, %v90
      %v92 = vrot.slane %v91, 1
      %v93 = vadd.f32 %v91, %v92
      %s94 = vtos %v93
      %v95 = vstv %s94
      %96 = vst [vmem:[#allocation8] sm:$0xff] %v95
    $region25: #{tpu_custom_call.1} parent=1 // pred_fallthru
      _
    // Predicated region
    $region26: #{tpu_custom_call.1} parent=1 // pred_check
      _
    $region27: #{tpu_custom_call.1} parent=1 // pred_check_branch
      %98 = sbr.rel (0) target = $region29
    $region28: #{tpu_custom_call.1} parent=1 // pred_region
      %s100 = ssub.s32 128, 128
      %101 = vsyncadd [#allocation5], %s100
      %s103 = sshll.u32 [#allocation8], 4
      %s104 = int_to_ptr.vmem [resolvable:$true] %s103
      %106 = dma.vmem_to_hbm [thread:$0]  %s104, 128, %s2, [#allocation5]
    $region29: #{tpu_custom_call.1} parent=1 // pred_fallthru
      _
    // Predicated region
    $region30: #{tpu_custom_call.1} parent=1 // pred_check
      _
    $region31: #{tpu_custom_call.1} parent=1 // pred_check_branch
      %108 = sbr.rel (0) target = $region33
    $region32: #{tpu_custom_call.1} parent=1 // pred_region
      %109 = dma.done [#allocation5], 128
    $region33: #{tpu_custom_call.1} parent=1 // pred_fallthru
      _
    %110 = vsyncpa [#allocation4], 1
    %111 = vsyncpa [#allocation7], 1
    %112 = vsyncpa [#allocation5], 1

</llo_original>
